<compile_context>
chip_gen: v6e
topology: v6e:2x2x1
jax: 0.10.0
libtpu: 0.0.40
codegen_flags: <defaults>
</compile_context>

<pallas_src>
import functools
import math

import jax
import jax.numpy as jnp
from jax.experimental import pallas as pl
from jax.experimental.pallas import tpu as pltpu


_DEFAULT_TILE_BUDGET = 4 * 1024 * 1024   # target bytes per input tile (f32)
_VMEM_LIMIT_BYTES = 32 * 1024 * 1024     # scoped-VMEM request (< v7x 64 MiB physical)


def _round_up(n, m):
    return (n + m - 1) // m * m


def _eps_for(dtype):
    return 1e-5 if dtype == jnp.float32 else 1e-3


# ----------------------------------------------------------------------------
# Kernels
# ----------------------------------------------------------------------------
def _layernorm_chan_kernel(x_ref, g_ref, o_ref, *, eps):
    """Channel-wise LayerNorm; the channel axis is axis 1 of the block.

    Works for both the 3-D (tb, C, HW) and 4-D (tb, C, tS, 128) layouts.
    All statistics are computed in float32.
    """
    x = x_ref[...].astype(jnp.float32)
    mean = jnp.mean(x, axis=1, keepdims=True)
    centered = x - mean
    var = jnp.mean(centered * centered, axis=1, keepdims=True)   # biased var
    inv = jax.lax.rsqrt(var + eps)                               # EUP rsqrt
    o_ref[...] = (centered * inv * g_ref[...]).astype(o_ref.dtype)


def _prenorm_proj_kernel(x_ref, g_ref, w_ref, o_ref, *, eps):
    """Fused channel LayerNorm + channel projection (1x1 conv) on the MXU.

    x_ref: (1, C, tHW), g_ref: (1, C, 1), w_ref: (O, C), o_ref: (1, O, tHW).
    The normalized activations stay in VMEM; only the projected output is
    written back to HBM.
    """
    x = x_ref[0].astype(jnp.float32)                      # (C, tHW)
    mean = jnp.mean(x, axis=0, keepdims=True)
    centered = x - mean
    var = jnp.mean(centered * centered, axis=0, keepdims=True)
    normed = centered * jax.lax.rsqrt(var + eps) * g_ref[0]   # (C, tHW) f32
    w = w_ref[...].astype(jnp.float32)                    # (O, C)
    o_ref[0] = jnp.dot(w, normed,
                       preferred_element_type=jnp.float32).astype(o_ref.dtype)


# ----------------------------------------------------------------------------
# Wrappers
# ----------------------------------------------------------------------------
def layer_norm_nchw(x, g, *, tile_budget_bytes=_DEFAULT_TILE_BUDGET):
    """Channel-wise LayerNorm of an NCHW tensor (the torch `LayerNorm`)."""
    B, C, H, W = x.shape
    HW = H * W
    eps = _eps_for(x.dtype)
    kernel = functools.partial(_layernorm_chan_kernel, eps=eps)
    g32 = g.reshape(1, C).astype(jnp.float32)

    if HW % 128 == 0:
        # 4-D lane-major layout: (B, C, S, 128).  Last two block dims come
        # from HW, so C < 8 does not waste sublanes, and the channel
        # reduction is C-1 plain VPU adds over an outer axis.
        S = HW // 128

        def slab_bytes(ts):                # f32 working bytes per batch row
            return C * ts * 128 * 4

        if slab_bytes(S) <= tile_budget_bytes:
            tS = S
            tb = max(1, min(B, tile_budget_bytes // slab_bytes(S)))
            while B % tb:                  # keep the grid exact
                tb -= 1
        else:
            tb = 1
            tS = max(8, (tile_budget_bytes // (C * 128 * 4)) // 8 * 8)
            tS = min(tS, S)                # either a multiple of 8 or full S

        grid = (pl.cdiv(B, tb), pl.cdiv(S, tS))
        x_in = x.reshape(B, C, S, 128)
        g_in = g32.reshape(1, C, 1, 1)
        in_specs = [
            pl.BlockSpec((tb, C, tS, 128), lambda i, j: (i, 0, j, 0)),
            pl.BlockSpec((1, C, 1, 1), lambda i, j: (0, 0, 0, 0)),  # resident
        ]
        out_specs = pl.BlockSpec((tb, C, tS, 128), lambda i, j: (i, 0, j, 0))
        out_shape = jax.ShapeDtypeStruct((B, C, S, 128), x.dtype)
        semantics = ("parallel", "parallel")
    else:
        # Fallback: (B, C, HW) with the full spatial extent per block (the
        # last two block dims equal the array dims, so the (8,128)
        # divisibility rule does not apply).  Tile over batch only.
        slab = _round_up(C, 8) * _round_up(HW, 128) * 4
        tb = max(1, min(B, tile_budget_bytes // max(slab, 1)))
        while B % tb:
            tb -= 1
        grid = (pl.cdiv(B, tb),)
        x_in = x.reshape(B, C, HW)
        g_in = g32.reshape(1, C, 1)
        in_specs = [
            pl.BlockSpec((tb, C, HW), lambda i: (i, 0, 0)),
            pl.BlockSpec((1, C, 1), lambda i: (0, 0, 0)),           # resident
        ]
        out_specs = pl.BlockSpec((tb, C, HW), lambda i: (i, 0, 0))
        out_shape = jax.ShapeDtypeStruct((B, C, HW), x.dtype)
        semantics = ("parallel",)

    out = pl.pallas_call(
        kernel,
        out_shape=out_shape,
        grid=grid,
        in_specs=in_specs,
        out_specs=out_specs,
        compiler_params=pltpu.CompilerParams(
            dimension_semantics=semantics,
            vmem_limit_bytes=_VMEM_LIMIT_BYTES),
    )(x_in, g_in)
    return out.reshape(B, C, H, W)


def pre_norm(x, g, fn, **kwargs):
    """PreNorm.forward for an arbitrary wrapped `fn`: fn(LayerNorm(x)).

    # TODO(synk): an arbitrary `fn` (e.g. full attention) runs as plain JAX
    # after the norm; when `fn` starts with a channel projection use
    # `pre_norm_projection` below, which fuses the projection into the kernel.
    """
    return fn(layer_norm_nchw(x, g, **kwargs))


def pre_norm_projection(x, g, w, *, tile_budget_bytes=_DEFAULT_TILE_BUDGET):
    """Fused PreNorm + 1x1-conv channel projection.

    Equivalent to einsum('oc,bchw->bohw', w, LayerNorm(x)); the normalized
    activations never hit HBM.
    """
    B, C, H, W = x.shape
    O = w.shape[0]
    HW = H * W
    eps = _eps_for(x.dtype)
    kernel = functools.partial(_prenorm_proj_kernel, eps=eps)
    x3 = x.reshape(B, C, HW)
    g3 = g.reshape(1, C, 1).astype(jnp.float32)
    w2 = w.reshape(O, C)

    if HW % 128 == 0:
        # f32 working bytes per lane column: x tile + normed temp + out tile,
        # with sublane padding on C and O.
        per_lane = (_round_up(C, 8) * 2 + _round_up(O, 8)) * 4
        tHW = max(128, (tile_budget_bytes // per_lane) // 128 * 128)
        tHW = min(tHW, HW)
    else:
        tHW = HW
    grid = (B, pl.cdiv(HW, tHW))

    out = pl.pallas_call(
        kernel,
        out_shape=jax.ShapeDtypeStruct((B, O, HW), x.dtype),
        grid=grid,
        in_specs=[
            pl.BlockSpec((1, C, tHW), lambda b, l: (b, 0, l)),
            pl.BlockSpec((1, C, 1), lambda b, l: (0, 0, 0)),    # resident
            pl.BlockSpec((O, C), lambda b, l: (0, 0)),          # resident
        ],
        out_specs=pl.BlockSpec((1, O, tHW), lambda b, l: (b, 0, l)),
        compiler_params=pltpu.CompilerParams(
            dimension_semantics=("parallel", "parallel"),
            vmem_limit_bytes=_VMEM_LIMIT_BYTES),
    )(x3, g3, w2)
    return out.reshape(B, O, H, W)


# ----------------------------------------------------------------------------
# Reference
# ----------------------------------------------------------------------------
def _reference_pre_norm(x, g, fn):
    eps = _eps_for(x.dtype)
    x32 = x.astype(jnp.float32)
    mean = jnp.mean(x32, axis=1, keepdims=True)
    var = jnp.mean(jnp.square(x32 - mean), axis=1, keepdims=True)
    normed = ((x32 - mean) * jax.lax.rsqrt(var + eps)
              * g.astype(jnp.float32)).astype(x.dtype)
    return fn(normed)


if __name__ == "__main__":
    key = jax.random.PRNGKey(0)
    k1, k2, k3, k4, k5 = jax.random.split(key, 5)

    # --- case 1: PreNorm wrapping a 1x1-conv `fn` (generic plain-JAX fn) ---
    B, C, H, W = 2, 4, 16, 16
    x = jax.random.normal(k1, (B, C, H, W), dtype=jnp.float32)
    g = 1.0 + 0.1 * jax.random.normal(k2, (1, C, 1, 1), dtype=jnp.float32)
    O = 8
    w = jax.random.normal(k3, (O, C), dtype=jnp.float32) / math.sqrt(C)
    fn = lambda t: jnp.einsum("oc,bchw->bohw", w, t)

    out = jax.block_until_ready(pre_norm(x, g, fn))
    ref = _reference_pre_norm(x, g, fn)
    assert out.shape == (B, O, H, W), out.shape
    assert jnp.allclose(out, ref, atol=1e-5, rtol=1e-5), "pre_norm mismatch"

    # --- case 2: fused PreNorm + projection (norm never leaves VMEM) ---
    out_fused = jax.block_until_ready(pre_norm_projection(x, g, w))
    assert out_fused.shape == (B, O, H, W), out_fused.shape
    assert jnp.allclose(out_fused, ref, atol=1e-5, rtol=1e-5), "fused mismatch"

    # --- case 3: multi-tile 2-D grid (batch x HW slabs) via a tiny budget ---
    B3, C3, H3, W3 = 2, 4, 64, 64
    x3 = jax.random.normal(k4, (B3, C3, H3, W3), dtype=jnp.float32)
    g3 = jnp.ones((1, C3, 1, 1), dtype=jnp.float32)
    out3 = jax.block_until_ready(
        layer_norm_nchw(x3, g3, tile_budget_bytes=C3 * 8 * 128 * 4))
    ref3 = _reference_pre_norm(x3, g3, lambda t: t)
    assert jnp.allclose(out3, ref3, atol=1e-5, rtol=1e-5), "gridded mismatch"

    # --- case 4: HW not a multiple of 128 -> 3-D fallback layout ---
    B4, C4, H4, W4 = 2, 4, 10, 10
    x4 = jax.random.normal(k5, (B4, C4, H4, W4), dtype=jnp.float32)
    g4 = 1.0 + 0.05 * jnp.arange(C4, dtype=jnp.float32).reshape(1, C4, 1, 1)
    out4 = jax.block_until_ready(layer_norm_nchw(x4, g4))
    ref4 = _reference_pre_norm(x4, g4, lambda t: t)
    assert jnp.allclose(out4, ref4, atol=1e-5, rtol=1e-5), "fallback mismatch"

    print("KERNEL_OK")
</pallas_src>

<mosaic_0001>
module attributes {stable_mosaic.version = 11 : i64} {
  func.func @_layernorm_chan_kernel(%arg0: i32, %arg1: i32, %arg2: memref<2x4x2x128xf32, #tpu.memory_space<vmem>>, %arg3: memref<1x4x1x1xf32, #tpu.memory_space<vmem>>, %arg4: memref<2x4x2x128xf32, #tpu.memory_space<vmem>>) attributes {dimension_semantics = [#tpu.dimension_semantics<parallel>, #tpu.dimension_semantics<parallel>], iteration_bounds = array<i64: 1, 1>, scalar_prefetch = 0 : i64, scratch_operands = 0 : i64, tpu.core_type = #tpu.core_type<tc>, window_params = [{transform_indices = @transform_0, window_bounds = array<i64: 2, 4, 2, 128>}, {pipeline_mode = #tpu.pipeline_mode<synchronous>, transform_indices = @transform_1, window_bounds = array<i64: 1, 4, 1, 1>}, {transform_indices = @transform_2, window_bounds = array<i64: 2, 4, 2, 128>}]} {
    %c0 = arith.constant 0 : index
    %c0_0 = arith.constant 0 : index
    %c0_1 = arith.constant 0 : index
    %c0_2 = arith.constant 0 : index
    %0 = vector.load %arg2[%c0, %c0_0, %c0_1, %c0_2] : memref<2x4x2x128xf32, #tpu.memory_space<vmem>>, vector<2x4x2x128xf32>
    %cst = arith.constant dense<0.000000e+00> : vector<2x2x128xf32>
    %1 = vector.multi_reduction <add>, %0, %cst [1] : vector<2x4x2x128xf32> to vector<2x2x128xf32>
    %2 = vector.shape_cast %1 : vector<2x2x128xf32> to vector<2x1x2x128xf32>
    %cst_3 = arith.constant 4.000000e+00 : f32
    %3 = vector.broadcast %cst_3 : f32 to vector<2x1x2x128xf32>
    %4 = arith.divf %2, %3 : vector<2x1x2x128xf32>
    %5 = vector.broadcast %4 : vector<2x1x2x128xf32> to vector<2x4x2x128xf32>
    %6 = arith.subf %0, %5 : vector<2x4x2x128xf32>
    %7 = arith.mulf %6, %6 : vector<2x4x2x128xf32>
    %cst_4 = arith.constant dense<0.000000e+00> : vector<2x2x128xf32>
    %8 = vector.multi_reduction <add>, %7, %cst_4 [1] : vector<2x4x2x128xf32> to vector<2x2x128xf32>
    %9 = vector.shape_cast %8 : vector<2x2x128xf32> to vector<2x1x2x128xf32>
    %cst_5 = arith.constant 4.000000e+00 : f32
    %10 = vector.broadcast %cst_5 : f32 to vector<2x1x2x128xf32>
    %11 = arith.divf %9, %10 : vector<2x1x2x128xf32>
    %cst_6 = arith.constant 9.99999974E-6 : f32
    %12 = vector.broadcast %cst_6 : f32 to vector<2x1x2x128xf32>
    %13 = arith.addf %11, %12 : vector<2x1x2x128xf32>
    %14 = math.rsqrt %13 : vector<2x1x2x128xf32>
    %15 = vector.broadcast %14 : vector<2x1x2x128xf32> to vector<2x4x2x128xf32>
    %16 = arith.mulf %6, %15 : vector<2x4x2x128xf32>
    %c0_7 = arith.constant 0 : index
    %c0_8 = arith.constant 0 : index
    %c0_9 = arith.constant 0 : index
    %c0_10 = arith.constant 0 : index
    %17 = vector.load %arg3[%c0_7, %c0_8, %c0_9, %c0_10] : memref<1x4x1x1xf32, #tpu.memory_space<vmem>>, vector<1x4x1x1xf32>
    %18 = vector.broadcast %17 : vector<1x4x1x1xf32> to vector<2x4x2x128xf32>
    %19 = arith.mulf %16, %18 : vector<2x4x2x128xf32>
    %c0_11 = arith.constant 0 : index
    %c0_12 = arith.constant 0 : index
    %c0_13 = arith.constant 0 : index
    %c0_14 = arith.constant 0 : index
    %20 = vector.load %arg4[%c0_11, %c0_12, %c0_13, %c0_14] : memref<2x4x2x128xf32, #tpu.memory_space<vmem>>, vector<2x4x2x128xf32>
    tpu.vector_store %arg4[%c0_11, %c0_12, %c0_13, %c0_14], %19 {strides = array<i32>} : memref<2x4x2x128xf32, #tpu.memory_space<vmem>>, vector<2x4x2x128xf32>,
    return
  }
  func.func @transform_0(%arg0: i32, %arg1: i32) -> (i32, i32, i32, i32) {
    %c0_i32 = arith.constant 0 : i32
    %c0_i32_0 = arith.constant 0 : i32
    %c0_i32_1 = arith.constant 0 : i32
    return %arg0, %c0_i32, %arg1, %c0_i32_0 : i32, i32, i32, i32
  }
  func.func @transform_1(%arg0: i32, %arg1: i32) -> (i32, i32, i32, i32) {
    %c0_i32 = arith.constant 0 : i32
    %c0_i32_0 = arith.constant 0 : i32
    %c0_i32_1 = arith.constant 0 : i32
    %c0_i32_2 = arith.constant 0 : i32
    %c0_i32_3 = arith.constant 0 : i32
    return %c0_i32, %c0_i32_0, %c0_i32_1, %c0_i32_2 : i32, i32, i32, i32
  }
  func.func @transform_2(%arg0: i32, %arg1: i32) -> (i32, i32, i32, i32) {
    %c0_i32 = arith.constant 0 : i32
    %c0_i32_0 = arith.constant 0 : i32
    %c0_i32_1 = arith.constant 0 : i32
    return %arg0, %c0_i32, %arg1, %c0_i32_0 : i32, i32, i32, i32
  }
}

</mosaic_0001>

<llo_original>
// kernel: tpu_custom_call.1
$region0: #{tpu_custom_call.1}
  #allocation0 [shape = 'u32[]', space=smem, size = 0x4, offset = 0x4, fixed_abs, tag = 'smem constant byte address 0x4 - core index']
  #allocation1 [shape = 'u32[144,128]{1,0:T(1,128)}', space=vmem, size = 0x12000, scoped, tag = 'internal scratch']
  %s0 = inlined_call_operand.hbm [shape: f32[2,4,2,128], index: 0, kind: input, shape index: {}]
  %s1 = inlined_call_operand.vmem [shape: f32[1,4,1,1], index: 1, kind: input, shape index: {}]
  %s2 = inlined_call_operand.hbm [shape: f32[2,4,2,128], index: 2, kind: output, shape index: {}]
  %s3 = sld [smem:[#allocation0]]
  $region22: #{tpu_custom_call.1} parent=0
    _
  %s5 = ssub.s32 1, %s3
  %s6 = scalar_select 0, %s5, %s3
  $region1: #{tpu_custom_call.1} parent=0
    #allocation2 [shape = 'u8[8192]{0}', space=vmem, size = 0x2000, scoped, tag = 'input window, operand 0, single buffered']
    #allocation3 [shape = 's32[1]{0}', space=sflag, size = 0x4, scoped, tag = 'scoped memory for tpu_custom_call.1']
    #allocation4 [shape = 's32[1]{0}', space=sflag, size = 0x4, scoped, tag = 'scoped memory for tpu_custom_call.1']
    #allocation5 [shape = 'u8[8192]{0}', space=vmem, size = 0x2000, scoped, tag = 'output window, operand 0, single buffered']
    %7 = vsyncpa [#allocation3], 0
    %8 = vsyncpa [#allocation4], 0
    // Predicated region
    $region2: #{tpu_custom_call.1} parent=1 // pred_check
      _
    $region3: #{tpu_custom_call.1} parent=1 // pred_check_branch
      %10 = sbr.rel (0) target = $region5
    $region4: #{tpu_custom_call.1} parent=1 // pred_region
      %s12 = ssub.s32 256, 256
      %13 = vsyncadd [#allocation3], %s12
      %s14 = sshll.u32 [#allocation2], 4
      %s15 = int_to_ptr.vmem [resolvable:$true] %s14
      %20 = dma.hbm_to_vmem [thread:$0]  %s0, 256, %s15, [#allocation3], 32, 32, 2
    $region5: #{tpu_custom_call.1} parent=1 // pred_fallthru
      _
    // Predicated region
    $region6: #{tpu_custom_call.1} parent=1 // pred_check
      _
    $region7: #{tpu_custom_call.1} parent=1 // pred_check_branch
      %22 = sbr.rel (0) target = $region9
    $region8: #{tpu_custom_call.1} parent=1 // pred_region
      _
    $region9: #{tpu_custom_call.1} parent=1 // pred_fallthru
      _
    // Predicated region
    $region10: #{tpu_custom_call.1} parent=1 // pred_check
      _
    $region11: #{tpu_custom_call.1} parent=1 // pred_check_branch
      %24 = sbr.rel (0) target = $region13
    $region12: #{tpu_custom_call.1} parent=1 // pred_region
      %25 = dma.done [#allocation3], 256
    $region13: #{tpu_custom_call.1} parent=1 // pred_fallthru
      _
    %v26 = vld [vmem:[#allocation2] sm:$0x3]
    %v27 = vld [vmem:[#allocation2 + $0x2] sm:$0x3]
    %v28 = vld [vmem:[#allocation2 + $0x4] sm:$0x3]
    %v29 = vld [vmem:[#allocation2 + $0x6] sm:$0x3]
    %v30 = vld [vmem:[#allocation2 + $0x8] sm:$0x3]
    %v31 = vld [vmem:[#allocation2 + $0xa] sm:$0x3]
    %v32 = vld [vmem:[#allocation2 + $0xc] sm:$0x3]
    %v33 = vld [vmem:[#allocation2 + $0xe] sm:$0x3]
    %vm34 = vcmask 1041408
    %v35 = vsel %vm34, %v26, 0.0
    %v36 = vsel %vm34, %v27, 0.0
    %v37 = vadd.f32 %v35, %v36
    %v38 = vsel %vm34, %v28, 0.0
    %v39 = vadd.f32 %v37, %v38
    %v40 = vsel %vm34, %v29, 0.0
    %v41 = vadd.f32 %v39, %v40
    %v42 = vsel %vm34, %v30, 0.0
    %v43 = vsel %vm34, %v31, 0.0
    %v44 = vadd.f32 %v42, %v43
    %v45 = vsel %vm34, %v32, 0.0
    %v46 = vadd.f32 %v44, %v45
    %v47 = vsel %vm34, %v33, 0.0
    %v48 = vadd.f32 %v46, %v47
    %v49 = vrcp.pop 4.0
    %v50 = vmul.f32 %v41, %v49
    %v51 = vmul.f32 %v48, %v49
    %v52 = vsub.f32 %v26, %v50
    %v53 = vsub.f32 %v27, %v50
    %v54 = vsub.f32 %v28, %v50
    %v55 = vsub.f32 %v29, %v50
    %v56 = vsub.f32 %v30, %v51
    %v57 = vsub.f32 %v31, %v51
    %v58 = vsub.f32 %v32, %v51
    %v59 = vsub.f32 %v33, %v51
    %v60 = vmul.f32 %v52, %v52
    %v61 = vmul.f32 %v53, %v53
    %v62 = vmul.f32 %v54, %v54
    %v63 = vmul.f32 %v55, %v55
    %v64 = vmul.f32 %v56, %v56
    %v65 = vmul.f32 %v57, %v57
    %v66 = vmul.f32 %v58, %v58
    %v67 = vmul.f32 %v59, %v59
    %v68 = vsel %vm34, %v60, 0.0
    %v69 = vsel %vm34, %v61, 0.0
    %v70 = vadd.f32 %v68, %v69
    %v71 = vsel %vm34, %v62, 0.0
    %v72 = vadd.f32 %v70, %v71
    %v73 = vsel %vm34, %v63, 0.0
    %v74 = vadd.f32 %v72, %v73
    %v75 = vsel %vm34, %v64, 0.0
    %v76 = vsel %vm34, %v65, 0.0
    %v77 = vadd.f32 %v75, %v76
    %v78 = vsel %vm34, %v66, 0.0
    %v79 = vadd.f32 %v77, %v78
    %v80 = vsel %vm34, %v67, 0.0
    %v81 = vadd.f32 %v79, %v80
    %v82 = vmul.f32 %v74, %v49
    %v83 = vmul.f32 %v81, %v49
    %v84 = vadd.f32 %v82, 1e-05
    %v85 = vadd.f32 %v83, 1e-05
    %v86 = vrsqrt.pop %v84
    %v87 = vrsqrt.pop %v85
    %v88 = vmul.f32 %v52, %v86
    %v89 = vmul.f32 %v53, %v86
    %v90 = vmul.f32 %v54, %v86
    %v91 = vmul.f32 %v55, %v86
    %v92 = vmul.f32 %v56, %v87
    %v93 = vmul.f32 %v57, %v87
    %v94 = vmul.f32 %v58, %v87
    %v95 = vmul.f32 %v59, %v87
    %v96 = vld [vmem:[%s1] sm:$0x1]
    %v97 = vld [vmem:[%s1 + $0x1] sm:$0x1]
    %v98 = vld [vmem:[%s1 + $0x2] sm:$0x1]
    %v99 = vld [vmem:[%s1 + $0x3] sm:$0x1]
    %v104 = vlaneseq
    %v105 = vshrl.u32 %v104, 7
    %v106 = vsub.s32 0, %v105
    %v107 = vrot.slane %v96, %v106
    %v108 = vlaneseq
    %v109 = vshrl.u32 %v108, 7
    %v110 = vsub.s32 0, %v109
    %v111 = vrot.slane %v97, %v110
    %v112 = vlaneseq
    %v113 = vshrl.u32 %v112, 7
    %v114 = vsub.s32 0, %v113
    %v115 = vrot.slane %v98, %v114
    %v116 = vlaneseq
    %v117 = vshrl.u32 %v116, 7
    %v118 = vsub.s32 0, %v117
    %v119 = vrot.slane %v99, %v118
    %120 = vset.pattern.permute.xlu0 0
    %121 = vperm.xlu0 %120, %v107
    %v122 = vpop.permute.xlu0 %121
    %124 = vset.pattern.permute.xlu0 0
    %125 = vperm.xlu0 %124, %v111
    %v126 = vpop.permute.xlu0 %125
    %128 = vset.pattern.permute.xlu0 0
    %129 = vperm.xlu0 %128, %v115
    %v130 = vpop.permute.xlu0 %129
    %132 = vset.pattern.permute.xlu0 0
    %133 = vperm.xlu0 %132, %v119
    %v134 = vpop.permute.xlu0 %133
    %v136 = vmul.f32 %v88, %v122
    %v137 = vmul.f32 %v89, %v126
    %v138 = vmul.f32 %v90, %v130
    %v139 = vmul.f32 %v91, %v134
    %v140 = vmul.f32 %v92, %v122
    %v141 = vmul.f32 %v93, %v126
    %v142 = vmul.f32 %v94, %v130
    %v143 = vmul.f32 %v95, %v134
    %144 = vst [vmem:[#allocation5] sm:$0x3] %v136
    %145 = vst [vmem:[#allocation5 + $0x2] sm:$0x3] %v137
    %146 = vst [vmem:[#allocation5 + $0x4] sm:$0x3] %v138
    %147 = vst [vmem:[#allocation5 + $0x6] sm:$0x3] %v139
    %148 = vst [vmem:[#allocation5 + $0x8] sm:$0x3] %v140
    %149 = vst [vmem:[#allocation5 + $0xa] sm:$0x3] %v141
    %150 = vst [vmem:[#allocation5 + $0xc] sm:$0x3] %v142
    %151 = vst [vmem:[#allocation5 + $0xe] sm:$0x3] %v143
    // Predicated region
    $region14: #{tpu_custom_call.1} parent=1 // pred_check
      _
    $region15: #{tpu_custom_call.1} parent=1 // pred_check_branch
      %153 = sbr.rel (0) target = $region17
    $region16: #{tpu_custom_call.1} parent=1 // pred_region
      %s155 = ssub.s32 256, 256
      %156 = vsyncadd [#allocation4], %s155
      %s157 = sshll.u32 [#allocation5], 4
      %s158 = int_to_ptr.vmem [resolvable:$true] %s157
      %163 = dma.vmem_to_hbm [thread:$0]  %s158, 256, %s2, [#allocation4], 32, 32, 2
    $region17: #{tpu_custom_call.1} parent=1 // pred_fallthru
      _
    // Predicated region
    $region18: #{tpu_custom_call.1} parent=1 // pred_check
      _
    $region19: #{tpu_custom_call.1} parent=1 // pred_check_branch
      %165 = sbr.rel (0) target = $region21
    $region20: #{tpu_custom_call.1} parent=1 // pred_region
      %166 = dma.done [#allocation4], 256
    $region21: #{tpu_custom_call.1} parent=1 // pred_fallthru
      _
    %167 = vsyncpa [#allocation3], 1
    %168 = vsyncpa [#allocation4], 1

</llo_original>
